<compile_context>
chip_gen: v6e
topology: v6e:2x2x1
jax: 0.10.0
libtpu: 0.0.40
codegen_flags: <defaults>
</compile_context>

<pallas_src>
import functools

import jax
import jax.numpy as jnp
from jax.experimental import pallas as pl
from jax.experimental.pallas import tpu as pltpu


def _round_up(n, m):
    return ((n + m - 1) // m) * m


def _mlp_kernel(x_ref, w1_ref, b1_ref, w2_ref, b2_ref, w3_ref, b3_ref, o_ref):
    # fc1 + ReLU (f32 MXU accumulation)
    h1 = jnp.dot(x_ref[...], w1_ref[...], preferred_element_type=jnp.float32)
    h1 = jnp.maximum(h1 + b1_ref[...], 0.0)
    # fc2 + ReLU
    h2 = jnp.dot(h1, w2_ref[...], preferred_element_type=jnp.float32)
    h2 = jnp.maximum(h2 + b2_ref[...], 0.0)
    # fc3 (no activation)
    out = jnp.dot(h2, w3_ref[...], preferred_element_type=jnp.float32)
    o_ref[...] = (out + b3_ref[...]).astype(o_ref.dtype)


@functools.partial(jax.jit, static_argnames=("block_b",))
def ann_v2_forward(x, params, *, block_b=256):
    """Fused ANN_V2 forward pass.

    x:      (B, inputs) float32
    params: dict with w1 (inputs,256), b1 (1,256), w2 (256,256), b2 (1,256),
            w3 (256,outputs), b3 (1,outputs)
    """
    w1, b1 = params["w1"], params["b1"]
    w2, b2 = params["w2"], params["b2"]
    w3, b3 = params["w3"], params["b3"]

    B, inputs = x.shape
    hidden = w1.shape[1]
    outputs = w3.shape[1]

    # ---- Lane-dense output: pad output features up to a multiple of 128. ----
    out_pad = _round_up(max(outputs, 128), 128)
    if out_pad != outputs:
        w3p = jnp.zeros((hidden, out_pad), w3.dtype).at[:, :outputs].set(w3)
        b3p = jnp.zeros((1, out_pad), b3.dtype).at[:, :outputs].set(b3)
    else:
        w3p, b3p = w3, b3

    # ---- Batch tiling: multiple of 8 sublanes; big tiles fill the MXU M-dim. ----
    tb = min(block_b, _round_up(B, 8))
    b_pad = _round_up(B, tb)
    if b_pad != B:
        x_p = jnp.zeros((b_pad, inputs), x.dtype).at[:B].set(x)
    else:
        x_p = x

    grid = (b_pad // tb,)

    # Weights / biases: same block for every grid step -> DMA'd once, VMEM-resident.
    def resident(a):
        return pl.BlockSpec(a.shape, lambda i: (0,) * a.ndim)

    itemsize = jnp.dtype(x.dtype).itemsize
    flops = 2 * b_pad * (inputs * hidden + hidden * hidden + hidden * out_pad)
    bytes_accessed = (
        x_p.size + w1.size + b1.size + w2.size + b2.size + w3p.size + b3p.size
        + b_pad * out_pad
    ) * itemsize

    out_p = pl.pallas_call(
        _mlp_kernel,
        out_shape=jax.ShapeDtypeStruct((b_pad, out_pad), x.dtype),
        grid=grid,
        in_specs=[
            pl.BlockSpec((tb, inputs), lambda i: (i, 0)),   # x tile, pipelined
            resident(w1), resident(b1),
            resident(w2), resident(b2),
            resident(w3p), resident(b3p),
        ],
        out_specs=pl.BlockSpec((tb, out_pad), lambda i: (i, 0)),
        compiler_params=pltpu.CompilerParams(
            # Batch axis is embarrassingly parallel -> megacore sharding on v7x.
            dimension_semantics=("parallel",),
            # NOTE: no vmem_limit_bytes override; weights + double-buffered tiles
            # fit comfortably inside the default scoped VMEM on v5e/v6e/v7x.
        ),
        cost_estimate=pl.CostEstimate(
            flops=flops, transcendentals=0, bytes_accessed=bytes_accessed
        ),
    )(x_p, w1, b1, w2, b2, w3p, b3p)

    # Slice off batch padding and output-lane padding.
    return out_p[:B, :outputs]
    # TODO(synk): optional bf16 weight/activation path (keep f32 MXU accumulation)
    # for ~2x MXU throughput / half weight DMA bytes on v6e/v7x.


def init_params(key, inputs, outputs, hidden=256, dtype=jnp.float32):
    """Deterministic init mirroring nn.Linear shapes (weights stored transposed)."""
    ks = jax.random.split(key, 6)

    def lin(kw, kb, fan_in, fan_out):
        bound = 1.0 / jnp.sqrt(fan_in)
        w = jax.random.uniform(kw, (fan_in, fan_out), dtype, -bound, bound)
        b = jax.random.uniform(kb, (1, fan_out), dtype, -bound, bound)
        return w, b

    w1, b1 = lin(ks[0], ks[1], inputs, hidden)
    w2, b2 = lin(ks[2], ks[3], hidden, hidden)
    w3, b3 = lin(ks[4], ks[5], hidden, outputs)
    return {"w1": w1, "b1": b1, "w2": w2, "b2": b2, "w3": w3, "b3": b3}


def ann_v2_reference(x, p):
    h1 = jnp.maximum(x @ p["w1"] + p["b1"], 0.0)
    h2 = jnp.maximum(h1 @ p["w2"] + p["b2"], 0.0)
    return h2 @ p["w3"] + p["b3"]


if __name__ == "__main__":
    key = jax.random.PRNGKey(0)
    k_x, k_p, k_x2 = jax.random.split(key, 3)

    # Small shapes consistent with the module.
    B, inputs, outputs = 8, 32, 8
    x = jax.random.normal(k_x, (B, inputs), jnp.float32)
    params = init_params(k_p, inputs, outputs)

    out = jax.block_until_ready(ann_v2_forward(x, params))
    ref = ann_v2_reference(x, params)
    assert out.shape == (B, outputs), out.shape
    assert jnp.allclose(out, ref, atol=1e-4, rtol=1e-4), "mismatch vs reference (B=8)"

    # Exercise the batch-tiled / padded path (B not a multiple of the tile).
    B2 = 200
    x2 = jax.random.normal(k_x2, (B2, inputs), jnp.float32)
    out2 = jax.block_until_ready(ann_v2_forward(x2, params, block_b=128))
    ref2 = ann_v2_reference(x2, params)
    assert out2.shape == (B2, outputs), out2.shape
    assert jnp.allclose(out2, ref2, atol=1e-4, rtol=1e-4), "mismatch vs reference (B=200)"

    print("KERNEL_OK")
</pallas_src>

<mosaic_0001>
module attributes {stable_mosaic.version = 11 : i64} {
  func.func @_mlp_kernel(%arg0: i32, %arg1: memref<8x32xf32, #tpu.memory_space<vmem>>, %arg2: memref<32x256xf32, #tpu.memory_space<vmem>>, %arg3: memref<1x256xf32, #tpu.memory_space<vmem>>, %arg4: memref<256x256xf32, #tpu.memory_space<vmem>>, %arg5: memref<1x256xf32, #tpu.memory_space<vmem>>, %arg6: memref<256x128xf32, #tpu.memory_space<vmem>>, %arg7: memref<1x128xf32, #tpu.memory_space<vmem>>, %arg8: memref<8x128xf32, #tpu.memory_space<vmem>>) attributes {dimension_semantics = [#tpu.dimension_semantics<parallel>], iteration_bounds = array<i64: 1>, scalar_prefetch = 0 : i64, scratch_operands = 0 : i64, tpu.core_type = #tpu.core_type<tc>, window_params = [{transform_indices = @transform_0, window_bounds = array<i64: 8, 32>}, {pipeline_mode = #tpu.pipeline_mode<synchronous>, transform_indices = @transform_1, window_bounds = array<i64: 32, 256>}, {pipeline_mode = #tpu.pipeline_mode<synchronous>, transform_indices = @transform_2, window_bounds = array<i64: 1, 256>}, {pipeline_mode = #tpu.pipeline_mode<synchronous>, transform_indices = @transform_3, window_bounds = array<i64: 256, 256>}, {pipeline_mode = #tpu.pipeline_mode<synchronous>, transform_indices = @transform_4, window_bounds = array<i64: 1, 256>}, {pipeline_mode = #tpu.pipeline_mode<synchronous>, transform_indices = @transform_5, window_bounds = array<i64: 256, 128>}, {pipeline_mode = #tpu.pipeline_mode<synchronous>, transform_indices = @transform_6, window_bounds = array<i64: 1, 128>}, {transform_indices = @transform_7, window_bounds = array<i64: 8, 128>}]} {
    %c0 = arith.constant 0 : index
    %c0_0 = arith.constant 0 : index
    %0 = vector.load %arg1[%c0, %c0_0] : memref<8x32xf32, #tpu.memory_space<vmem>>, vector<8x32xf32>
    %c0_1 = arith.constant 0 : index
    %c0_2 = arith.constant 0 : index
    %1 = vector.load %arg2[%c0_1, %c0_2] : memref<32x256xf32, #tpu.memory_space<vmem>>, vector<32x256xf32>
    %cst = arith.constant dense<0.000000e+00> : vector<8x256xf32>
    %2 = tpu.matmul %0, %1, %cst {dimension_numbers = #tpu.dot_dimension_numbers<[1], [0], [0], [1], [0, 0, 1, 1], [], []>} : vector<8x32xf32>, vector<32x256xf32>, vector<8x256xf32> -> vector<8x256xf32>
    %c0_3 = arith.constant 0 : index
    %c0_4 = arith.constant 0 : index
    %3 = vector.load %arg3[%c0_3, %c0_4] : memref<1x256xf32, #tpu.memory_space<vmem>>, vector<1x256xf32>
    %4 = vector.broadcast %3 : vector<1x256xf32> to vector<8x256xf32>
    %5 = arith.addf %2, %4 : vector<8x256xf32>
    %cst_5 = arith.constant 0.000000e+00 : f32
    %6 = vector.broadcast %cst_5 : f32 to vector<8x256xf32>
    %7 = arith.maximumf %5, %6 : vector<8x256xf32>
    %c0_6 = arith.constant 0 : index
    %c0_7 = arith.constant 0 : index
    %8 = vector.load %arg4[%c0_6, %c0_7] : memref<256x256xf32, #tpu.memory_space<vmem>>, vector<256x256xf32>
    %cst_8 = arith.constant dense<0.000000e+00> : vector<8x256xf32>
    %9 = tpu.matmul %7, %8, %cst_8 {dimension_numbers = #tpu.dot_dimension_numbers<[1], [0], [0], [1], [0, 0, 1, 1], [], []>} : vector<8x256xf32>, vector<256x256xf32>, vector<8x256xf32> -> vector<8x256xf32>
    %c0_9 = arith.constant 0 : index
    %c0_10 = arith.constant 0 : index
    %10 = vector.load %arg5[%c0_9, %c0_10] : memref<1x256xf32, #tpu.memory_space<vmem>>, vector<1x256xf32>
    %11 = vector.broadcast %10 : vector<1x256xf32> to vector<8x256xf32>
    %12 = arith.addf %9, %11 : vector<8x256xf32>
    %cst_11 = arith.constant 0.000000e+00 : f32
    %13 = vector.broadcast %cst_11 : f32 to vector<8x256xf32>
    %14 = arith.maximumf %12, %13 : vector<8x256xf32>
    %c0_12 = arith.constant 0 : index
    %c0_13 = arith.constant 0 : index
    %15 = vector.load %arg6[%c0_12, %c0_13] : memref<256x128xf32, #tpu.memory_space<vmem>>, vector<256x128xf32>
    %cst_14 = arith.constant dense<0.000000e+00> : vector<8x128xf32>
    %16 = tpu.matmul %14, %15, %cst_14 {dimension_numbers = #tpu.dot_dimension_numbers<[1], [0], [0], [1], [0, 0, 1, 1], [], []>} : vector<8x256xf32>, vector<256x128xf32>, vector<8x128xf32> -> vector<8x128xf32>
    %c0_15 = arith.constant 0 : index
    %c0_16 = arith.constant 0 : index
    %17 = vector.load %arg7[%c0_15, %c0_16] : memref<1x128xf32, #tpu.memory_space<vmem>>, vector<1x128xf32>
    %18 = vector.broadcast %17 : vector<1x128xf32> to vector<8x128xf32>
    %19 = arith.addf %16, %18 : vector<8x128xf32>
    %c0_17 = arith.constant 0 : index
    %c0_18 = arith.constant 0 : index
    %20 = vector.load %arg8[%c0_17, %c0_18] : memref<8x128xf32, #tpu.memory_space<vmem>>, vector<8x128xf32>
    tpu.vector_store %arg8[%c0_17, %c0_18], %19 {strides = array<i32>} : memref<8x128xf32, #tpu.memory_space<vmem>>, vector<8x128xf32>,
    return
  }
  func.func @transform_0(%arg0: i32) -> (i32, i32) {
    %c0_i32 = arith.constant 0 : i32
    %c0_i32_0 = arith.constant 0 : i32
    return %arg0, %c0_i32 : i32, i32
  }
  func.func @transform_1(%arg0: i32) -> (i32, i32) {
    %c0_i32 = arith.constant 0 : i32
    %c0_i32_0 = arith.constant 0 : i32
    %c0_i32_1 = arith.constant 0 : i32
    return %c0_i32, %c0_i32_0 : i32, i32
  }
  func.func @transform_2(%arg0: i32) -> (i32, i32) {
    %c0_i32 = arith.constant 0 : i32
    %c0_i32_0 = arith.constant 0 : i32
    %c0_i32_1 = arith.constant 0 : i32
    return %c0_i32, %c0_i32_0 : i32, i32
  }
  func.func @transform_3(%arg0: i32) -> (i32, i32) {
    %c0_i32 = arith.constant 0 : i32
    %c0_i32_0 = arith.constant 0 : i32
    %c0_i32_1 = arith.constant 0 : i32
    return %c0_i32, %c0_i32_0 : i32, i32
  }
  func.func @transform_4(%arg0: i32) -> (i32, i32) {
    %c0_i32 = arith.constant 0 : i32
    %c0_i32_0 = arith.constant 0 : i32
    %c0_i32_1 = arith.constant 0 : i32
    return %c0_i32, %c0_i32_0 : i32, i32
  }
  func.func @transform_5(%arg0: i32) -> (i32, i32) {
    %c0_i32 = arith.constant 0 : i32
    %c0_i32_0 = arith.constant 0 : i32
    %c0_i32_1 = arith.constant 0 : i32
    return %c0_i32, %c0_i32_0 : i32, i32
  }
  func.func @transform_6(%arg0: i32) -> (i32, i32) {
    %c0_i32 = arith.constant 0 : i32
    %c0_i32_0 = arith.constant 0 : i32
    %c0_i32_1 = arith.constant 0 : i32
    return %c0_i32, %c0_i32_0 : i32, i32
  }
  func.func @transform_7(%arg0: i32) -> (i32, i32) {
    %c0_i32 = arith.constant 0 : i32
    %c0_i32_0 = arith.constant 0 : i32
    return %arg0, %c0_i32 : i32, i32
  }
}

</mosaic_0001>

<llo_original>
// kernel: ann_v2_forward.1
$region0: #{ann_v2_forward.1}
  #allocation0 [shape = 'u32[]', space=smem, size = 0x4, offset = 0x4, fixed_abs, tag = 'smem constant byte address 0x4 - core index']
  #allocation1 [shape = 'u32[144,128]{1,0:T(1,128)}', space=vmem, size = 0x12000, scoped, tag = 'internal scratch']
  %s0 = inlined_call_operand.vmem [shape: f32[8,32], index: 0, kind: input, shape index: {}]
  %s1 = inlined_call_operand.vmem [shape: f32[32,256], index: 1, kind: input, shape index: {}]
  %s2 = inlined_call_operand.vmem [shape: f32[1,256], index: 2, kind: input, shape index: {}]
  %s3 = inlined_call_operand.vmem [shape: f32[256,256], index: 3, kind: input, shape index: {}]
  %s4 = inlined_call_operand.vmem [shape: f32[1,256], index: 4, kind: input, shape index: {}]
  %s5 = inlined_call_operand.vmem [shape: f32[256,128], index: 5, kind: input, shape index: {}]
  %s6 = inlined_call_operand.vmem [shape: f32[1,128], index: 6, kind: input, shape index: {}]
  %s7 = inlined_call_operand.hbm [shape: f32[8,128], index: 7, kind: output, shape index: {}]
  %s8 = sld [smem:[#allocation0]]
  $region38: #{ann_v2_forward.1} parent=0
    _
  %s10 = ssub.s32 1, %s8
  %s11 = scalar_select 0, %s10, %s8
  $region1: #{ann_v2_forward.1} parent=0
    #allocation2 [shape = 'u8[4096]{0}', space=vmem, size = 0x1000, scoped, tag = 'output window, operand 0, single buffered']
    #allocation3 [shape = 's32[1]{0}', space=sflag, size = 0x4, scoped, tag = 'scoped memory for ann_v2_forward.1']
    %12 = vsyncpa [#allocation3], 0
    // Predicated region
    $region2: #{ann_v2_forward.1} parent=1 // pred_check
      _
    $region3: #{ann_v2_forward.1} parent=1 // pred_check_branch
      %14 = sbr.rel (0) target = $region5
    $region4: #{ann_v2_forward.1} parent=1 // pred_region
      _
    $region5: #{ann_v2_forward.1} parent=1 // pred_fallthru
      _
    // Predicated region
    $region6: #{ann_v2_forward.1} parent=1 // pred_check
      _
    $region7: #{ann_v2_forward.1} parent=1 // pred_check_branch
      %16 = sbr.rel (0) target = $region9
    $region8: #{ann_v2_forward.1} parent=1 // pred_region
      _
    $region9: #{ann_v2_forward.1} parent=1 // pred_fallthru
      _
    // Predicated region
    $region10: #{ann_v2_forward.1} parent=1 // pred_check
      _
    $region11: #{ann_v2_forward.1} parent=1 // pred_check_branch
      %18 = sbr.rel (0) target = $region13
    $region12: #{ann_v2_forward.1} parent=1 // pred_region
      _
    $region13: #{ann_v2_forward.1} parent=1 // pred_fallthru
      _
    // Predicated region
    $region14: #{ann_v2_forward.1} parent=1 // pred_check
      _
    $region15: #{ann_v2_forward.1} parent=1 // pred_check_branch
      %20 = sbr.rel (0) target = $region17
    $region16: #{ann_v2_forward.1} parent=1 // pred_region
      _
    $region17: #{ann_v2_forward.1} parent=1 // pred_fallthru
      _
    // Predicated region
    $region18: #{ann_v2_forward.1} parent=1 // pred_check
      _
    $region19: #{ann_v2_forward.1} parent=1 // pred_check_branch
      %22 = sbr.rel (0) target = $region21
    $region20: #{ann_v2_forward.1} parent=1 // pred_region
      _
    $region21: #{ann_v2_forward.1} parent=1 // pred_fallthru
      _
    // Predicated region
    $region22: #{ann_v2_forward.1} parent=1 // pred_check
      _
    $region23: #{ann_v2_forward.1} parent=1 // pred_check_branch
      %24 = sbr.rel (0) target = $region25
    $region24: #{ann_v2_forward.1} parent=1 // pred_region
      _
    $region25: #{ann_v2_forward.1} parent=1 // pred_fallthru
      _
    // Predicated region
    $region26: #{ann_v2_forward.1} parent=1 // pred_check
      _
    $region27: #{ann_v2_forward.1} parent=1 // pred_check_branch
      %26 = sbr.rel (0) target = $region29
    $region28: #{ann_v2_forward.1} parent=1 // pred_region
      _
    $region29: #{ann_v2_forward.1} parent=1 // pred_fallthru
      _
    %v27 = vld [vmem:[%s0] sm:$0xff]
    %v28 = vld [vmem:[%s1] sm:$0xff]
    %v29 = vld [vmem:[%s1 + $0x8] sm:$0xff]
    %v30 = vld [vmem:[%s1 + $0x10] sm:$0xff]
    %v31 = vld [vmem:[%s1 + $0x18] sm:$0xff]
    %v32 = vld [vmem:[%s1 + $0x20] sm:$0xff]
    %v33 = vld [vmem:[%s1 + $0x28] sm:$0xff]
    %v34 = vld [vmem:[%s1 + $0x30] sm:$0xff]
    %v35 = vld [vmem:[%s1 + $0x38] sm:$0xff]
    %v36 = vld [vmem:[%s2] sm:$0x3]
    %v38 = vlaneseq
    %v39 = vshrl.u32 %v38, 7
    %v40 = vsub.s32 0, %v39
    %v41 = vrot.slane %v36, %v40
    %v42 = vlaneseq
    %v43 = vshrl.u32 %v42, 7
    %v44 = vsub.s32 1, %v43
    %v45 = vrot.slane %v36, %v44
    %vm48 = vcmask 261120
    %v50 = vsel %vm48, %v27, 0
    %52 = vmatprep.subr.mxu0 0.0
    %53 = vmatpush1.msra.mxu0 0.0
    %54 = vmatprep.subr.mxu0 0.0
    %55 = vmatpush1.msra.mxu0 0.0
    %56 = vmatprep.subr.mxu0 0.0
    %57 = vmatpush1.msra.mxu0 0.0
    %58 = vmatprep.subr.mxu0 0.0
    %59 = vmatpush1.msra.mxu0 0.0
    %60 = vmatprep.subr.mxu0 0.0
    %61 = vmatpush1.msra.mxu0 0.0
    %62 = vmatprep.subr.mxu0 0.0
    %63 = vmatpush1.msra.mxu0 0.0
    %64 = vmatprep.subr.mxu0 0.0
    %65 = vmatpush1.msra.mxu0 0.0
    %66 = vmatprep.subr.mxu0 0.0
    %67 = vmatpush1.msra.mxu0 0.0
    %68 = vmatprep.subr.mxu0 0.0
    %69 = vmatpush1.msra.mxu0 0.0
    %70 = vmatprep.subr.mxu0 0.0
    %71 = vmatpush1.msra.mxu0 0.0
    %72 = vmatprep.subr.mxu0 0.0
    %73 = vmatpush1.msra.mxu0 0.0
    %74 = vmatprep.subr.mxu0 0.0
    %75 = vmatpush1.msra.mxu0 0.0
    %76 = vmatprep.subr.mxu0 %v35
    %77 = vmatpush1.msra.mxu0 %v34
    %78 = vmatprep.subr.mxu0 %v33
    %79 = vmatpush1.msra.mxu0 %v32
    %80 = vmatprep.subr.mxu0 %v31
    %81 = vmatpush1.msra.mxu0 %v30
    %82 = vmatprep.subr.mxu0 %v29
    %83 = vmatpush1.msra.mxu0 %v28
    %84 = vmatprep.subr.mxu0 0.0
    %85 = vmatpush2.msra.mxu0 0.0
    %86 = vmatprep.subr.mxu0 0.0
    %87 = vmatpush2.msra.mxu0 0.0
    %88 = vmatprep.subr.mxu0 0.0
    %89 = vmatpush2.msra.mxu0 0.0
    %90 = vmatprep.subr.mxu0 0.0
    %91 = vmatpush2.msra.mxu0 0.0
    %92 = vmatprep.subr.mxu0 0.0
    %93 = vmatpush2.msra.mxu0 0.0
    %94 = vmatprep.subr.mxu0 0.0
    %95 = vmatpush2.msra.mxu0 0.0
    %96 = vmatprep.subr.mxu0 0.0
    %97 = vmatpush2.msra.mxu0 0.0
    %98 = vmatprep.subr.mxu0 0.0
    %99 = vmatpush2.msra.mxu0 0.0
    %100 = vmatprep.subr.mxu0 0.0
    %101 = vmatpush2.msra.mxu0 0.0
    %102 = vmatprep.subr.mxu0 0.0
    %103 = vmatpush2.msra.mxu0 0.0
    %104 = vmatprep.subr.mxu0 0.0
    %105 = vmatpush2.msra.mxu0 0.0
    %106 = vmatprep.subr.mxu0 0.0
    %107 = vmatpush2.msra.mxu0 0.0
    %108 = vmatprep.subr.mxu0 0.0
    %109 = vmatpush2.msra.mxu0 0.0
    %110 = vmatprep.subr.mxu0 0.0
    %111 = vmatpush2.msra.mxu0 0.0
    %112 = vmatprep.subr.mxu0 0.0
    %113 = vmatpush2.msra.mxu0 0.0
    %114 = vmatprep.subr.mxu0 0.0
    %115 = vmatpush2.msra.mxu0 0.0
    %116 = vmatprep.mubr.f32.mxu0 0.0
    %117 = vmatmul.mubr.f32.gmra.mxu0 %v50
    %v118 = vpop.f32.mrf.mxu0
    %v119 = vadd.f32 %v41, %v118
    %v120 = vpop.f32.mrf.mxu0
    %v121 = vadd.f32 %v45, %v120
    %122 = vdwg.mxu0
    %v123 = vmax.f32 %v119, 0.0
    %v124 = vmax.f32 %v121, 0.0
    %v125 = vld [vmem:[%s3] sm:$0xff]
    %v126 = vld [vmem:[%s3 + $0x8] sm:$0xff]
    %v127 = vld [vmem:[%s3 + $0x10] sm:$0xff]
    %v128 = vld [vmem:[%s3 + $0x18] sm:$0xff]
    %v129 = vld [vmem:[%s3 + $0x20] sm:$0xff]
    %v130 = vld [vmem:[%s3 + $0x28] sm:$0xff]
    %v131 = vld [vmem:[%s3 + $0x30] sm:$0xff]
    %v132 = vld [vmem:[%s3 + $0x38] sm:$0xff]
    %v133 = vld [vmem:[%s3 + $0x40] sm:$0xff]
    %v134 = vld [vmem:[%s3 + $0x48] sm:$0xff]
    %v135 = vld [vmem:[%s3 + $0x50] sm:$0xff]
    %v136 = vld [vmem:[%s3 + $0x58] sm:$0xff]
    %v137 = vld [vmem:[%s3 + $0x60] sm:$0xff]
    %v138 = vld [vmem:[%s3 + $0x68] sm:$0xff]
    %v139 = vld [vmem:[%s3 + $0x70] sm:$0xff]
    %v140 = vld [vmem:[%s3 + $0x78] sm:$0xff]
    %v141 = vld [vmem:[%s3 + $0x80] sm:$0xff]
    %v142 = vld [vmem:[%s3 + $0x88] sm:$0xff]
    %v143 = vld [vmem:[%s3 + $0x90] sm:$0xff]
    %v144 = vld [vmem:[%s3 + $0x98] sm:$0xff]
    %v145 = vld [vmem:[%s3 + $0xa0] sm:$0xff]
    %v146 = vld [vmem:[%s3 + $0xa8] sm:$0xff]
    %v147 = vld [vmem:[%s3 + $0xb0] sm:$0xff]
    %v148 = vld [vmem:[%s3 + $0xb8] sm:$0xff]
    %v149 = vld [vmem:[%s3 + $0xc0] sm:$0xff]
    %v150 = vld [vmem:[%s3 + $0xc8] sm:$0xff]
    %v151 = vld [vmem:[%s3 + $0xd0] sm:$0xff]
    %v152 = vld [vmem:[%s3 + $0xd8] sm:$0xff]
    %v153 = vld [vmem:[%s3 + $0xe0] sm:$0xff]
    %v154 = vld [vmem:[%s3 + $0xe8] sm:$0xff]
    %v155 = vld [vmem:[%s3 + $0xf0] sm:$0xff]
    %v156 = vld [vmem:[%s3 + $0xf8] sm:$0xff]
    %v157 = vld [vmem:[%s3 + $0x100] sm:$0xff]
    %v158 = vld [vmem:[%s3 + $0x108] sm:$0xff]
    %v159 = vld [vmem:[%s3 + $0x110] sm:$0xff]
    %v160 = vld [vmem:[%s3 + $0x118] sm:$0xff]
    %v161 = vld [vmem:[%s3 + $0x120] sm:$0xff]
    %v162 = vld [vmem:[%s3 + $0x128] sm:$0xff]
    %v163 = vld [vmem:[%s3 + $0x130] sm:$0xff]
    %v164 = vld [vmem:[%s3 + $0x138] sm:$0xff]
    %v165 = vld [vmem:[%s3 + $0x140] sm:$0xff]
    %v166 = vld [vmem:[%s3 + $0x148] sm:$0xff]
    %v167 = vld [vmem:[%s3 + $0x150] sm:$0xff]
    %v168 = vld [vmem:[%s3 + $0x158] sm:$0xff]
    %v169 = vld [vmem:[%s3 + $0x160] sm:$0xff]
    %v170 = vld [vmem:[%s3 + $0x168] sm:$0xff]
    %v171 = vld [vmem:[%s3 + $0x170] sm:$0xff]
    %v172 = vld [vmem:[%s3 + $0x178] sm:$0xff]
    %v173 = vld [vmem:[%s3 + $0x180] sm:$0xff]
    %v174 = vld [vmem:[%s3 + $0x188] sm:$0xff]
    %v175 = vld [vmem:[%s3 + $0x190] sm:$0xff]
    %v176 = vld [vmem:[%s3 + $0x198] sm:$0xff]
    %v177 = vld [vmem:[%s3 + $0x1a0] sm:$0xff]
    %v178 = vld [vmem:[%s3 + $0x1a8] sm:$0xff]
    %v179 = vld [vmem:[%s3 + $0x1b0] sm:$0xff]
    %v180 = vld [vmem:[%s3 + $0x1b8] sm:$0xff]
    %v181 = vld [vmem:[%s3 + $0x1c0] sm:$0xff]
    %v182 = vld [vmem:[%s3 + $0x1c8] sm:$0xff]
    %v183 = vld [vmem:[%s3 + $0x1d0] sm:$0xff]
    %v184 = vld [vmem:[%s3 + $0x1d8] sm:$0xff]
    %v185 = vld [vmem:[%s3 + $0x1e0] sm:$0xff]
    %v186 = vld [vmem:[%s3 + $0x1e8] sm:$0xff]
    %v187 = vld [vmem:[%s3 + $0x1f0] sm:$0xff]
    %v188 = vld [vmem:[%s3 + $0x1f8] sm:$0xff]
    %v189 = vld [vmem:[%s4] sm:$0x3]
    %v191 = vlaneseq
    %v192 = vshrl.u32 %v191, 7
    %v193 = vsub.s32 0, %v192
    %v194 = vrot.slane %v189, %v193
    %v195 = vlaneseq
    %v196 = vshrl.u32 %v195, 7
    %v197 = vsub.s32 1, %v196
    %v198 = vrot.slane %v189, %v197
    %201 = vmatprep.subr.mxu0 %v156
    %202 = vmatpush1.msra.mxu0 %v155
    %203 = vmatprep.subr.mxu0 %v154
    %204 = vmatpush1.msra.mxu0 %v153
    %205 = vmatprep.subr.mxu0 %v152
    %206 = vmatpush1.msra.mxu0 %v151
    %207 = vmatprep.subr.mxu0 %v150
    %208 = vmatpush1.msra.mxu0 %v149
    %209 = vmatprep.subr.mxu0 %v148
    %210 = vmatpush1.msra.mxu0 %v147
    %211 = vmatprep.subr.mxu0 %v146
    %212 = vmatpush1.msra.mxu0 %v145
    %213 = vmatprep.subr.mxu0 %v144
    %214 = vmatpush1.msra.mxu0 %v143
    %215 = vmatprep.subr.mxu0 %v142
    %216 = vmatpush1.msra.mxu0 %v141
    %217 = vmatprep.subr.mxu0 %v140
    %218 = vmatpush1.msra.mxu0 %v139
    %219 = vmatprep.subr.mxu0 %v138
    %220 = vmatpush1.msra.mxu0 %v137
    %221 = vmatprep.subr.mxu0 %v136
    %222 = vmatpush1.msra.mxu0 %v135
    %223 = vmatprep.subr.mxu0 %v134
    %224 = vmatpush1.msra.mxu0 %v133
    %225 = vmatprep.subr.mxu0 %v132
    %226 = vmatpush1.msra.mxu0 %v131
    %227 = vmatprep.subr.mxu0 %v130
    %228 = vmatpush1.msra.mxu0 %v129
    %229 = vmatprep.subr.mxu0 %v128
    %230 = vmatpush1.msra.mxu0 %v127
    %231 = vmatprep.subr.mxu0 %v126
    %232 = vmatpush1.msra.mxu0 %v125
    %233 = vmatprep.subr.mxu0 %v188
    %234 = vmatpush2.msra.mxu0 %v187
    %235 = vmatprep.subr.mxu0 %v186
    %236 = vmatpush2.msra.mxu0 %v185
    %237 = vmatprep.subr.mxu0 %v184
    %238 = vmatpush2.msra.mxu0 %v183
    %239 = vmatprep.subr.mxu0 %v182
    %240 = vmatpush2.msra.mxu0 %v181
    %241 = vmatprep.subr.mxu0 %v180
    %242 = vmatpush2.msra.mxu0 %v179
    %243 = vmatprep.subr.mxu0 %v178
    %244 = vmatpush2.msra.mxu0 %v177
    %245 = vmatprep.subr.mxu0 %v176
    %246 = vmatpush2.msra.mxu0 %v175
    %247 = vmatprep.subr.mxu0 %v174
    %248 = vmatpush2.msra.mxu0 %v173
    %249 = vmatprep.subr.mxu0 %v172
    %250 = vmatpush2.msra.mxu0 %v171
    %251 = vmatprep.subr.mxu0 %v170
    %252 = vmatpush2.msra.mxu0 %v169
    %253 = vmatprep.subr.mxu0 %v168
    %254 = vmatpush2.msra.mxu0 %v167
    %255 = vmatprep.subr.mxu0 %v166
    %256 = vmatpush2.msra.mxu0 %v165
    %257 = vmatprep.subr.mxu0 %v164
    %258 = vmatpush2.msra.mxu0 %v163
    %259 = vmatprep.subr.mxu0 %v162
    %260 = vmatpush2.msra.mxu0 %v161
    %261 = vmatprep.subr.mxu0 %v160
    %262 = vmatpush2.msra.mxu0 %v159
    %263 = vmatprep.subr.mxu0 %v158
    %264 = vmatpush2.msra.mxu0 %v157
    %265 = vmatprep.mubr.f32.mxu0 %v124
    %266 = vmatmul.mubr.f32.gmra.mxu0 %v123
    %v267 = vpop.f32.mrf.mxu0
    %v268 = vadd.f32 %v194, %v267
    %v269 = vpop.f32.mrf.mxu0
    %v270 = vadd.f32 %v198, %v269
    %271 = vdwg.mxu0
    %v272 = vmax.f32 %v268, 0.0
    %v273 = vmax.f32 %v270, 0.0
    %v274 = vld [vmem:[%s5] sm:$0xff]
    %v275 = vld [vmem:[%s5 + $0x8] sm:$0xff]
    %v276 = vld [vmem:[%s5 + $0x10] sm:$0xff]
    %v277 = vld [vmem:[%s5 + $0x18] sm:$0xff]
    %v278 = vld [vmem:[%s5 + $0x20] sm:$0xff]
    %v279 = vld [vmem:[%s5 + $0x28] sm:$0xff]
    %v280 = vld [vmem:[%s5 + $0x30] sm:$0xff]
    %v281 = vld [vmem:[%s5 + $0x38] sm:$0xff]
    %v282 = vld [vmem:[%s5 + $0x40] sm:$0xff]
    %v283 = vld [vmem:[%s5 + $0x48] sm:$0xff]
    %v284 = vld [vmem:[%s5 + $0x50] sm:$0xff]
    %v285 = vld [vmem:[%s5 + $0x58] sm:$0xff]
    %v286 = vld [vmem:[%s5 + $0x60] sm:$0xff]
    %v287 = vld [vmem:[%s5 + $0x68] sm:$0xff]
    %v288 = vld [vmem:[%s5 + $0x70] sm:$0xff]
    %v289 = vld [vmem:[%s5 + $0x78] sm:$0xff]
    %v290 = vld [vmem:[%s5 + $0x80] sm:$0xff]
    %v291 = vld [vmem:[%s5 + $0x88] sm:$0xff]
    %v292 = vld [vmem:[%s5 + $0x90] sm:$0xff]
    %v293 = vld [vmem:[%s5 + $0x98] sm:$0xff]
    %v294 = vld [vmem:[%s5 + $0xa0] sm:$0xff]
    %v295 = vld [vmem:[%s5 + $0xa8] sm:$0xff]
    %v296 = vld [vmem:[%s5 + $0xb0] sm:$0xff]
    %v297 = vld [vmem:[%s5 + $0xb8] sm:$0xff]
    %v298 = vld [vmem:[%s5 + $0xc0] sm:$0xff]
    %v299 = vld [vmem:[%s5 + $0xc8] sm:$0xff]
    %v300 = vld [vmem:[%s5 + $0xd0] sm:$0xff]
    %v301 = vld [vmem:[%s5 + $0xd8] sm:$0xff]
    %v302 = vld [vmem:[%s5 + $0xe0] sm:$0xff]
    %v303 = vld [vmem:[%s5 + $0xe8] sm:$0xff]
    %v304 = vld [vmem:[%s5 + $0xf0] sm:$0xff]
    %v305 = vld [vmem:[%s5 + $0xf8] sm:$0xff]
    %v306 = vld [vmem:[%s6] sm:$0x1]
    %v308 = vlaneseq
    %v309 = vshrl.u32 %v308, 7
    %v310 = vsub.s32 0, %v309
    %v311 = vrot.slane %v306, %v310
    %313 = vmatprep.subr.mxu0 0.0
    %314 = vmatpush1.msra.mxu0 %v289
    %315 = vmatprep.subr.mxu0 0.0
    %316 = vmatpush1.msra.mxu0 %v288
    %317 = vmatprep.subr.mxu0 0.0
    %318 = vmatpush1.msra.mxu0 %v287
    %319 = vmatprep.subr.mxu0 0.0
    %320 = vmatpush1.msra.mxu0 %v286
    %321 = vmatprep.subr.mxu0 0.0
    %322 = vmatpush1.msra.mxu0 %v285
    %323 = vmatprep.subr.mxu0 0.0
    %324 = vmatpush1.msra.mxu0 %v284
    %325 = vmatprep.subr.mxu0 0.0
    %326 = vmatpush1.msra.mxu0 %v283
    %327 = vmatprep.subr.mxu0 0.0
    %328 = vmatpush1.msra.mxu0 %v282
    %329 = vmatprep.subr.mxu0 0.0
    %330 = vmatpush1.msra.mxu0 %v281
    %331 = vmatprep.subr.mxu0 0.0
    %332 = vmatpush1.msra.mxu0 %v280
    %333 = vmatprep.subr.mxu0 0.0
    %334 = vmatpush1.msra.mxu0 %v279
    %335 = vmatprep.subr.mxu0 0.0
    %336 = vmatpush1.msra.mxu0 %v278
    %337 = vmatprep.subr.mxu0 0.0
    %338 = vmatpush1.msra.mxu0 %v277
    %339 = vmatprep.subr.mxu0 0.0
    %340 = vmatpush1.msra.mxu0 %v276
    %341 = vmatprep.subr.mxu0 0.0
    %342 = vmatpush1.msra.mxu0 %v275
    %343 = vmatprep.subr.mxu0 0.0
    %344 = vmatpush1.msra.mxu0 %v274
    %345 = vmatprep.subr.mxu0 0.0
    %346 = vmatpush2.msra.mxu0 %v305
    %347 = vmatprep.subr.mxu0 0.0
    %348 = vmatpush2.msra.mxu0 %v304
    %349 = vmatprep.subr.mxu0 0.0
    %350 = vmatpush2.msra.mxu0 %v303
    %351 = vmatprep.subr.mxu0 0.0
    %352 = vmatpush2.msra.mxu0 %v302
    %353 = vmatprep.subr.mxu0 0.0
    %354 = vmatpush2.msra.mxu0 %v301
    %355 = vmatprep.subr.mxu0 0.0
    %356 = vmatpush2.msra.mxu0 %v300
    %357 = vmatprep.subr.mxu0 0.0
    %358 = vmatpush2.msra.mxu0 %v299
    %359 = vmatprep.subr.mxu0 0.0
    %360 = vmatpush2.msra.mxu0 %v298
    %361 = vmatprep.subr.mxu0 0.0
    %362 = vmatpush2.msra.mxu0 %v297
    %363 = vmatprep.subr.mxu0 0.0
    %364 = vmatpush2.msra.mxu0 %v296
    %365 = vmatprep.subr.mxu0 0.0
    %366 = vmatpush2.msra.mxu0 %v295
    %367 = vmatprep.subr.mxu0 0.0
    %368 = vmatpush2.msra.mxu0 %v294
    %369 = vmatprep.subr.mxu0 0.0
    %370 = vmatpush2.msra.mxu0 %v293
    %371 = vmatprep.subr.mxu0 0.0
    %372 = vmatpush2.msra.mxu0 %v292
    %373 = vmatprep.subr.mxu0 0.0
    %374 = vmatpush2.msra.mxu0 %v291
    %375 = vmatprep.subr.mxu0 0.0
    %376 = vmatpush2.msra.mxu0 %v290
    %377 = vmatprep.mubr.f32.mxu0 %v273
    %378 = vmatmul.mubr.f32.gmra.mxu0 %v272
    %v379 = vpop.f32.mrf.mxu0
    %v380 = vadd.f32 %v311, %v379
    %v381 = vpop.f32.mrf.mxu0
    %382 = vdwg.mxu0
    %383 = vst [vmem:[#allocation2] sm:$0xff] %v380
    // Predicated region
    $region30: #{ann_v2_forward.1} parent=1 // pred_check
      _
    $region31: #{ann_v2_forward.1} parent=1 // pred_check_branch
      %385 = sbr.rel (0) target = $region33
    $region32: #{ann_v2_forward.1} parent=1 // pred_region
      %s387 = ssub.s32 128, 128
      %388 = vsyncadd [#allocation3], %s387
      %s390 = sshll.u32 [#allocation2], 4
      %s391 = int_to_ptr.vmem [resolvable:$true] %s390
      %393 = dma.vmem_to_hbm [thread:$0]  %s391, 128, %s7, [#allocation3]
    $region33: #{ann_v2_forward.1} parent=1 // pred_fallthru
      _
    // Predicated region
    $region34: #{ann_v2_forward.1} parent=1 // pred_check
      _
    $region35: #{ann_v2_forward.1} parent=1 // pred_check_branch
      %395 = sbr.rel (0) target = $region37
    $region36: #{ann_v2_forward.1} parent=1 // pred_region
      %396 = dma.done [#allocation3], 128
    $region37: #{ann_v2_forward.1} parent=1 // pred_fallthru
      _
    %397 = vsyncpa [#allocation3], 1

</llo_original>
